<compile_context>
chip_gen: v7x
topology: tpu7x:2x2x1
jax: 0.10.0
libtpu: 0.0.40
codegen_flags: <defaults>
</compile_context>

<pallas_src>
import functools

import jax
import jax.numpy as jnp
from jax.experimental import pallas as pl
from jax.experimental.pallas import tpu as pltpu


def _round_up(x, m):
    return ((x + m - 1) // m) * m


def _pad2(a, rows, cols):
    return jnp.pad(a, ((0, rows - a.shape[0]), (0, cols - a.shape[1])))


def _full_spec(shape):
    # Whole (already hardware-padded) array as a single VMEM block; no grid,
    # so the index_map takes no arguments and there is no multi-buffering.
    return pl.BlockSpec(shape, lambda: (0,) * len(shape))


def _vmem_limit_bytes():
    # Generation-aware VMEM budget with headroom: ~100 MiB on 128 MiB parts
    # (v5e/v6e), ~51 MiB on v7x (64 MiB per TensorCore).
    try:
        cap = int(pltpu.get_tpu_info().vmem_capacity_bytes)
    except Exception:  # pragma: no cover - conservative fallback
        cap = 64 * 1024 * 1024
    return min(int(cap * 0.8), 100 * 1024 * 1024)


def _fused_mlp_kernel(*refs, num_layers, n_valid, eps):
    """refs = [x, (w, gamma, beta) * (num_layers-1), w_last, b_last, out]."""
    x_ref = refs[0]
    o_ref = refs[-1]
    p = refs[1:-1]

    h = x_ref[...]                      # bf16 (n_pad, d_in_pad); padded rows/cols are zero
    n_pad = h.shape[0]
    inv_n = 1.0 / float(n_valid)

    # Row-validity mask, built once (bf16, exact 0/1), reused across layers.
    need_mask = n_valid != n_pad
    if need_mask:
        row_ids = jax.lax.broadcasted_iota(jnp.int32, (n_pad, 1), 0)
        row_mask = (row_ids < n_valid).astype(jnp.bfloat16)

    idx = 0
    for _ in range(num_layers - 1):     # static, fully unrolled inside the kernel
        w_ref, g_ref, be_ref = p[idx], p[idx + 1], p[idx + 2]
        idx += 3
        # Linear: bf16 operands, f32 MXU accumulator. The Linear bias is dropped
        # on purpose — it is exactly cancelled by the BN mean subtraction below.
        y = jnp.dot(h, w_ref[...], preferred_element_type=jnp.float32)
        # One-pass BatchNorm1d (training mode) stats. Padded rows of y are
        # exactly zero (zero rows of h, no bias), so unmasked column sums over
        # all n_pad rows equal the sums over the n_valid rows.
        sum_y = jnp.sum(y, axis=0, keepdims=True)
        sum_y2 = jnp.sum(y * y, axis=0, keepdims=True)
        mean = sum_y * inv_n
        var = sum_y2 * inv_n - mean * mean          # biased variance (PyTorch BN)
        y_hat = (y - mean) * jax.lax.rsqrt(var + eps)   # rsqrt -> EUP slot
        z = g_ref[...] * y_hat + be_ref[...]
        # ReLU, back to bf16 for the next MXU pass.
        h = jnp.maximum(z, 0.0).astype(jnp.bfloat16)
        if need_mask:
            h = h * row_mask            # keep padded rows exactly zero for the next layer

    w_ref, b_ref = p[idx], p[idx + 1]
    y = jnp.dot(h, w_ref[...], preferred_element_type=jnp.float32)
    o_ref[...] = (y + b_ref[...]).astype(o_ref.dtype)


def init_mlp_params(key, num_layers, input_dim, hidden_dim, output_dim):
    """Logical-shaped synthetic parameters matching the PyTorch module (f32)."""
    if num_layers < 1:
        raise ValueError("number of layers should be positive!")
    params = {"linears": [], "bns": []}
    if num_layers == 1:
        dims = [(input_dim, output_dim)]
    else:
        dims = [(input_dim, hidden_dim)]
        dims += [(hidden_dim, hidden_dim)] * (num_layers - 2)
        dims += [(hidden_dim, output_dim)]
    for (d_in, d_out) in dims:
        key, kw, kb = jax.random.split(key, 3)
        w = jax.random.normal(kw, (d_in, d_out), jnp.float32) * 0.1   # pre-transposed (d_in, d_out)
        b = jax.random.normal(kb, (1, d_out), jnp.float32) * 0.1
        params["linears"].append((w, b))
    for _ in range(max(num_layers - 1, 0)):
        key, kg, kbeta = jax.random.split(key, 3)
        gamma = 1.0 + 0.1 * jax.random.normal(kg, (1, hidden_dim), jnp.float32)
        beta = 0.1 * jax.random.normal(kbeta, (1, hidden_dim), jnp.float32)
        params["bns"].append((gamma, beta))
    return params


def prepare_params(params, num_layers, input_dim, output_dim):
    """One-time hardware prep: pad to lane-dense shapes, cast weights to bf16.

    Hidden-layer Linear biases are intentionally NOT included (mathematically
    cancelled by training-mode BN mean subtraction).
    """
    tensors = []
    dims = []
    for i in range(num_layers - 1):
        w, _b = params["linears"][i]
        gamma, beta = params["bns"][i]
        di_p = _round_up(w.shape[0], 128)
        do_p = _round_up(w.shape[1], 128)
        dims.append((di_p, do_p))
        tensors.append(_pad2(w.astype(jnp.bfloat16), di_p, do_p))
        tensors.append(_pad2(gamma, 1, do_p))
        tensors.append(_pad2(beta, 1, do_p))
    w, b = params["linears"][-1]
    di_p = _round_up(w.shape[0], 128)
    do_p = _round_up(w.shape[1], 128)
    dims.append((di_p, do_p))
    tensors.append(_pad2(w.astype(jnp.bfloat16), di_p, do_p))
    tensors.append(_pad2(b, 1, do_p))
    return {
        "num_layers": num_layers,
        "output_dim": output_dim,
        "input_dim_pad": _round_up(input_dim, 128),
        "output_dim_pad": do_p,
        "dims": dims,
        "tensors": [jax.device_put(t) for t in tensors],
    }


def mlp_forward(prepped, x, eps=1e-5):
    """Single fused Pallas call for the whole MLP forward pass."""
    num_layers = prepped["num_layers"]
    d_out = prepped["output_dim"]
    n, _ = x.shape
    n_pad = _round_up(max(n, 16), 16)          # bf16 vregs pack [16, 128]
    d_in_pad = prepped["input_dim_pad"]
    do_p = prepped["output_dim_pad"]

    # Single wrapper-side activation op: cast to bf16 + zero-pad to the
    # hardware block.  (Zero padding is exactly neutral for matmul/BN/ReLU.)
    x_p = _pad2(x.astype(jnp.bfloat16), n_pad, d_in_pad)
    inputs = [x_p] + list(prepped["tensors"])
    in_specs = [_full_spec(a.shape) for a in inputs]

    out_shape = (n_pad, do_p)
    flops = int(sum(2 * n_pad * di * do for (di, do) in prepped["dims"]))
    transcendentals = int(sum(do for (_, do) in prepped["dims"][:-1]))
    bytes_accessed = int(
        sum(t.size * t.dtype.itemsize for t in inputs)
        + out_shape[0] * out_shape[1] * 4
    )

    out = pl.pallas_call(
        functools.partial(_fused_mlp_kernel, num_layers=num_layers, n_valid=n, eps=eps),
        out_shape=jax.ShapeDtypeStruct(out_shape, jnp.float32),
        in_specs=in_specs,
        out_specs=_full_spec(out_shape),
        compiler_params=pltpu.CompilerParams(vmem_limit_bytes=_vmem_limit_bytes()),
        cost_estimate=pl.CostEstimate(
            flops=flops, transcendentals=transcendentals, bytes_accessed=bytes_accessed
        ),
    )(*inputs)
    return out[:n, :d_out]


def mlp_forward_ref(params, x, num_layers, eps=1e-5):
    """Pure-JAX reference (PyTorch semantics: BN training mode, hidden bias kept),
    mirroring the kernel's bf16-operand / f32-accumulate matmuls."""
    def dot(a, w):
        return jnp.dot(a.astype(jnp.bfloat16), w.astype(jnp.bfloat16),
                       preferred_element_type=jnp.float32)

    if num_layers == 1:
        w, b = params["linears"][0]
        return dot(x, w) + b
    h = x
    for i in range(num_layers - 1):
        w, b = params["linears"][i]
        gamma, beta = params["bns"][i]
        y = dot(h, w) + b
        mean = jnp.mean(y, axis=0, keepdims=True)
        var = jnp.mean((y - mean) ** 2, axis=0, keepdims=True)
        h = jnp.maximum(gamma * (y - mean) * jax.lax.rsqrt(var + eps) + beta, 0.0)
    w, b = params["linears"][-1]
    return dot(h, w) + b


if __name__ == "__main__":
    num_layers = 3
    input_dim = 16
    hidden_dim = 32
    output_dim = 8
    batch = 8

    key = jax.random.PRNGKey(0)
    key, kx = jax.random.split(key)
    x = jax.random.normal(kx, (batch, input_dim), jnp.float32)

    params = init_mlp_params(key, num_layers, input_dim, hidden_dim, output_dim)
    prepped = prepare_params(params, num_layers, input_dim, output_dim)  # one-time pad/cast

    out = mlp_forward(prepped, x)
    out = jax.block_until_ready(out)

    ref = mlp_forward_ref(params, x, num_layers)
    assert out.shape == (batch, output_dim)
    assert jnp.allclose(out, ref, atol=1e-3, rtol=1e-3), "mismatch vs reference"

    print("KERNEL_OK")
</pallas_src>

<mosaic_0001>
module attributes {stable_mosaic.version = 11 : i64} {
  func.func @_fused_mlp_kernel(%arg0: memref<16x128xbf16, #tpu.memory_space<vmem>>, %arg1: memref<128x128xbf16, #tpu.memory_space<vmem>>, %arg2: memref<1x128xf32, #tpu.memory_space<vmem>>, %arg3: memref<1x128xf32, #tpu.memory_space<vmem>>, %arg4: memref<128x128xbf16, #tpu.memory_space<vmem>>, %arg5: memref<1x128xf32, #tpu.memory_space<vmem>>, %arg6: memref<1x128xf32, #tpu.memory_space<vmem>>, %arg7: memref<128x128xbf16, #tpu.memory_space<vmem>>, %arg8: memref<1x128xf32, #tpu.memory_space<vmem>>, %arg9: memref<16x128xf32, #tpu.memory_space<vmem>>) attributes {dimension_semantics = [], scalar_prefetch = 0 : i64, scratch_operands = 0 : i64, tpu.core_type = #tpu.core_type<tc>} {
    %c0 = arith.constant 0 : index
    %c0_0 = arith.constant 0 : index
    %0 = vector.load %arg0[%c0, %c0_0] : memref<16x128xbf16, #tpu.memory_space<vmem>>, vector<16x128xbf16>
    %1 = tpu.iota {dimensions = array<i32: 0>} : vector<16x1xi32>
    %c8_i32 = arith.constant 8 : i32
    %2 = vector.broadcast %c8_i32 : i32 to vector<16x1xi32>
    %3 = arith.cmpi slt, %1, %2 : vector<16x1xi32>
    %4 = arith.extui %3 : vector<16x1xi1> to vector<16x1xi32>
    %5 = arith.sitofp %4 : vector<16x1xi32> to vector<16x1xf32>
    %6 = arith.truncf %5 : vector<16x1xf32> to vector<16x1xbf16>
    %c0_1 = arith.constant 0 : index
    %c0_2 = arith.constant 0 : index
    %7 = vector.load %arg1[%c0_1, %c0_2] : memref<128x128xbf16, #tpu.memory_space<vmem>>, vector<128x128xbf16>
    %cst = arith.constant dense<0.000000e+00> : vector<16x128xf32>
    %8 = tpu.matmul %0, %7, %cst {dimension_numbers = #tpu.dot_dimension_numbers<[1], [0], [0], [1], [0, 0, 1, 1], [], []>} : vector<16x128xbf16>, vector<128x128xbf16>, vector<16x128xf32> -> vector<16x128xf32>
    %cst_3 = arith.constant dense<0.000000e+00> : vector<128xf32>
    %9 = vector.multi_reduction <add>, %8, %cst_3 [0] : vector<16x128xf32> to vector<128xf32>
    %10 = vector.shape_cast %9 : vector<128xf32> to vector<1x128xf32>
    %11 = arith.mulf %8, %8 : vector<16x128xf32>
    %cst_4 = arith.constant dense<0.000000e+00> : vector<128xf32>
    %12 = vector.multi_reduction <add>, %11, %cst_4 [0] : vector<16x128xf32> to vector<128xf32>
    %13 = vector.shape_cast %12 : vector<128xf32> to vector<1x128xf32>
    %cst_5 = arith.constant 1.250000e-01 : f32
    %14 = vector.broadcast %cst_5 : f32 to vector<1x128xf32>
    %15 = arith.mulf %10, %14 : vector<1x128xf32>
    %cst_6 = arith.constant 1.250000e-01 : f32
    %16 = vector.broadcast %cst_6 : f32 to vector<1x128xf32>
    %17 = arith.mulf %13, %16 : vector<1x128xf32>
    %18 = arith.mulf %15, %15 : vector<1x128xf32>
    %19 = arith.subf %17, %18 : vector<1x128xf32>
    %20 = vector.broadcast %15 : vector<1x128xf32> to vector<16x128xf32>
    %21 = arith.subf %8, %20 : vector<16x128xf32>
    %cst_7 = arith.constant 9.99999974E-6 : f32
    %22 = vector.broadcast %cst_7 : f32 to vector<1x128xf32>
    %23 = arith.addf %19, %22 : vector<1x128xf32>
    %24 = math.rsqrt %23 : vector<1x128xf32>
    %25 = vector.broadcast %24 : vector<1x128xf32> to vector<16x128xf32>
    %26 = arith.mulf %21, %25 : vector<16x128xf32>
    %c0_8 = arith.constant 0 : index
    %c0_9 = arith.constant 0 : index
    %27 = vector.load %arg2[%c0_8, %c0_9] : memref<1x128xf32, #tpu.memory_space<vmem>>, vector<1x128xf32>
    %28 = vector.broadcast %27 : vector<1x128xf32> to vector<16x128xf32>
    %29 = arith.mulf %28, %26 : vector<16x128xf32>
    %c0_10 = arith.constant 0 : index
    %c0_11 = arith.constant 0 : index
    %30 = vector.load %arg3[%c0_10, %c0_11] : memref<1x128xf32, #tpu.memory_space<vmem>>, vector<1x128xf32>
    %31 = vector.broadcast %30 : vector<1x128xf32> to vector<16x128xf32>
    %32 = arith.addf %29, %31 : vector<16x128xf32>
    %cst_12 = arith.constant 0.000000e+00 : f32
    %33 = vector.broadcast %cst_12 : f32 to vector<16x128xf32>
    %34 = arith.maximumf %32, %33 : vector<16x128xf32>
    %35 = arith.truncf %34 : vector<16x128xf32> to vector<16x128xbf16>
    %36 = vector.broadcast %6 : vector<16x1xbf16> to vector<16x128xbf16>
    %37 = arith.mulf %35, %36 : vector<16x128xbf16>
    %c0_13 = arith.constant 0 : index
    %c0_14 = arith.constant 0 : index
    %38 = vector.load %arg4[%c0_13, %c0_14] : memref<128x128xbf16, #tpu.memory_space<vmem>>, vector<128x128xbf16>
    %cst_15 = arith.constant dense<0.000000e+00> : vector<16x128xf32>
    %39 = tpu.matmul %37, %38, %cst_15 {dimension_numbers = #tpu.dot_dimension_numbers<[1], [0], [0], [1], [0, 0, 1, 1], [], []>} : vector<16x128xbf16>, vector<128x128xbf16>, vector<16x128xf32> -> vector<16x128xf32>
    %cst_16 = arith.constant dense<0.000000e+00> : vector<128xf32>
    %40 = vector.multi_reduction <add>, %39, %cst_16 [0] : vector<16x128xf32> to vector<128xf32>
    %41 = vector.shape_cast %40 : vector<128xf32> to vector<1x128xf32>
    %42 = arith.mulf %39, %39 : vector<16x128xf32>
    %cst_17 = arith.constant dense<0.000000e+00> : vector<128xf32>
    %43 = vector.multi_reduction <add>, %42, %cst_17 [0] : vector<16x128xf32> to vector<128xf32>
    %44 = vector.shape_cast %43 : vector<128xf32> to vector<1x128xf32>
    %cst_18 = arith.constant 1.250000e-01 : f32
    %45 = vector.broadcast %cst_18 : f32 to vector<1x128xf32>
    %46 = arith.mulf %41, %45 : vector<1x128xf32>
    %cst_19 = arith.constant 1.250000e-01 : f32
    %47 = vector.broadcast %cst_19 : f32 to vector<1x128xf32>
    %48 = arith.mulf %44, %47 : vector<1x128xf32>
    %49 = arith.mulf %46, %46 : vector<1x128xf32>
    %50 = arith.subf %48, %49 : vector<1x128xf32>
    %51 = vector.broadcast %46 : vector<1x128xf32> to vector<16x128xf32>
    %52 = arith.subf %39, %51 : vector<16x128xf32>
    %cst_20 = arith.constant 9.99999974E-6 : f32
    %53 = vector.broadcast %cst_20 : f32 to vector<1x128xf32>
    %54 = arith.addf %50, %53 : vector<1x128xf32>
    %55 = math.rsqrt %54 : vector<1x128xf32>
    %56 = vector.broadcast %55 : vector<1x128xf32> to vector<16x128xf32>
    %57 = arith.mulf %52, %56 : vector<16x128xf32>
    %c0_21 = arith.constant 0 : index
    %c0_22 = arith.constant 0 : index
    %58 = vector.load %arg5[%c0_21, %c0_22] : memref<1x128xf32, #tpu.memory_space<vmem>>, vector<1x128xf32>
    %59 = vector.broadcast %58 : vector<1x128xf32> to vector<16x128xf32>
    %60 = arith.mulf %59, %57 : vector<16x128xf32>
    %c0_23 = arith.constant 0 : index
    %c0_24 = arith.constant 0 : index
    %61 = vector.load %arg6[%c0_23, %c0_24] : memref<1x128xf32, #tpu.memory_space<vmem>>, vector<1x128xf32>
    %62 = vector.broadcast %61 : vector<1x128xf32> to vector<16x128xf32>
    %63 = arith.addf %60, %62 : vector<16x128xf32>
    %cst_25 = arith.constant 0.000000e+00 : f32
    %64 = vector.broadcast %cst_25 : f32 to vector<16x128xf32>
    %65 = arith.maximumf %63, %64 : vector<16x128xf32>
    %66 = arith.truncf %65 : vector<16x128xf32> to vector<16x128xbf16>
    %67 = vector.broadcast %6 : vector<16x1xbf16> to vector<16x128xbf16>
    %68 = arith.mulf %66, %67 : vector<16x128xbf16>
    %c0_26 = arith.constant 0 : index
    %c0_27 = arith.constant 0 : index
    %69 = vector.load %arg7[%c0_26, %c0_27] : memref<128x128xbf16, #tpu.memory_space<vmem>>, vector<128x128xbf16>
    %cst_28 = arith.constant dense<0.000000e+00> : vector<16x128xf32>
    %70 = tpu.matmul %68, %69, %cst_28 {dimension_numbers = #tpu.dot_dimension_numbers<[1], [0], [0], [1], [0, 0, 1, 1], [], []>} : vector<16x128xbf16>, vector<128x128xbf16>, vector<16x128xf32> -> vector<16x128xf32>
    %c0_29 = arith.constant 0 : index
    %c0_30 = arith.constant 0 : index
    %71 = vector.load %arg8[%c0_29, %c0_30] : memref<1x128xf32, #tpu.memory_space<vmem>>, vector<1x128xf32>
    %72 = vector.broadcast %71 : vector<1x128xf32> to vector<16x128xf32>
    %73 = arith.addf %70, %72 : vector<16x128xf32>
    %c0_31 = arith.constant 0 : index
    %c0_32 = arith.constant 0 : index
    %74 = vector.load %arg9[%c0_31, %c0_32] : memref<16x128xf32, #tpu.memory_space<vmem>>, vector<16x128xf32>
    tpu.vector_store %arg9[%c0_31, %c0_32], %73 {strides = array<i32>} : memref<16x128xf32, #tpu.memory_space<vmem>>, vector<16x128xf32>,
    return
  }
}

</mosaic_0001>

<llo_original>
// kernel: tpu_custom_call.1
$region0: #{tpu_custom_call.1}
  #allocation0 [shape = 'u32[]', space=smem, size = 0x4, offset = 0x4, fixed_abs, tag = 'smem constant byte address 0x4 - core index']
  #allocation1 [shape = 'u32[144,128]{1,0:T(1,128)}', space=vmem, size = 0x12000, scoped, tag = 'internal scratch']
  %s0 = inlined_call_operand.hbm [shape: bf16[16,128], index: 0, kind: input, shape index: {}]
  %s1 = inlined_call_operand.hbm [shape: bf16[128,128], index: 1, kind: input, shape index: {}]
  %s2 = inlined_call_operand.vmem [shape: f32[1,128], index: 2, kind: input, shape index: {}]
  %s3 = inlined_call_operand.vmem [shape: f32[1,128], index: 3, kind: input, shape index: {}]
  %s4 = inlined_call_operand.hbm [shape: bf16[128,128], index: 4, kind: input, shape index: {}]
  %s5 = inlined_call_operand.vmem [shape: f32[1,128], index: 5, kind: input, shape index: {}]
  %s6 = inlined_call_operand.vmem [shape: f32[1,128], index: 6, kind: input, shape index: {}]
  %s7 = inlined_call_operand.hbm [shape: bf16[128,128], index: 7, kind: input, shape index: {}]
  %s8 = inlined_call_operand.vmem [shape: f32[1,128], index: 8, kind: input, shape index: {}]
  %s9 = inlined_call_operand.hbm [shape: f32[16,128], index: 9, kind: output, shape index: {}]
  %s10 = sld [smem:[#allocation0]]
  $region62: #{tpu_custom_call.1} parent=0
    _
  %s12 = ssub.s32 1, %s10
  %s13 = scalar_select 0, %s12, %s10
  $region1: #{tpu_custom_call.1} parent=0
    #allocation2 [shape = 'u8[4096]{0}', space=vmem, size = 0x1000, scoped, tag = 'input window, operand 0, single buffered']
    #allocation3 [shape = 's32[1]{0}', space=sflag, size = 0x4, scoped, tag = 'scoped memory for tpu_custom_call.1']
    #allocation4 [shape = 's32[1]{0}', space=sflag, size = 0x4, scoped, tag = 'scoped memory for tpu_custom_call.1']
    #allocation5 [shape = 'u8[32768]{0}', space=vmem, size = 0x8000, scoped, tag = 'input window, operand 1, single buffered']
    #allocation6 [shape = 's32[1]{0}', space=sflag, size = 0x4, scoped, tag = 'scoped memory for tpu_custom_call.1']
    #allocation7 [shape = 'u8[32768]{0}', space=vmem, size = 0x8000, scoped, tag = 'input window, operand 4, single buffered']
    #allocation8 [shape = 'u8[32768]{0}', space=vmem, size = 0x8000, scoped, tag = 'input window, operand 7, single buffered']
    #allocation9 [shape = 's32[1]{0}', space=sflag, size = 0x4, scoped, tag = 'scoped memory for tpu_custom_call.1']
    #allocation10 [shape = 'u8[8192]{0}', space=vmem, size = 0x2000, scoped, tag = 'output window, operand 0, single buffered']
    %14 = vsyncpa [#allocation3], 0
    %15 = vsyncpa [#allocation6], 0
    %16 = vsyncpa [#allocation9], 0
    %17 = vsyncpa [#allocation4], 0
    // Predicated region
    $region2: #{tpu_custom_call.1} parent=1 // pred_check
      _
    $region3: #{tpu_custom_call.1} parent=1 // pred_check_branch
      %19 = sbr.rel (0) target = $region5
    $region4: #{tpu_custom_call.1} parent=1 // pred_region
      %s21 = ssub.s32 128, 128
      %22 = vsyncadd [#allocation3], %s21
      %s23 = sshll.u32 [#allocation2], 4
      %s24 = int_to_ptr.vmem [resolvable:$true] %s23
      %29 = dma.hbm_to_vmem [thread:$0]  %s0, 128, %s24, [#allocation3], 64, 64, 4
    $region5: #{tpu_custom_call.1} parent=1 // pred_fallthru
      _
    // Predicated region
    $region6: #{tpu_custom_call.1} parent=1 // pred_check
      _
    $region7: #{tpu_custom_call.1} parent=1 // pred_check_branch
      %31 = sbr.rel (0) target = $region9
    $region8: #{tpu_custom_call.1} parent=1 // pred_region
      %s33 = ssub.s32 1024, 1024
      %34 = vsyncadd [#allocation6], %s33
      %s35 = sshll.u32 [#allocation5], 4
      %s36 = int_to_ptr.vmem [resolvable:$true] %s35
      %41 = dma.hbm_to_vmem [thread:$0]  %s1, 1024, %s36, [#allocation6], 64, 64, 4
    $region9: #{tpu_custom_call.1} parent=1 // pred_fallthru
      _
    // Predicated region
    $region10: #{tpu_custom_call.1} parent=1 // pred_check
      _
    $region11: #{tpu_custom_call.1} parent=1 // pred_check_branch
      %43 = sbr.rel (0) target = $region13
    $region12: #{tpu_custom_call.1} parent=1 // pred_region
      _
    $region13: #{tpu_custom_call.1} parent=1 // pred_fallthru
      _
    // Predicated region
    $region14: #{tpu_custom_call.1} parent=1 // pred_check
      _
    $region15: #{tpu_custom_call.1} parent=1 // pred_check_branch
      %45 = sbr.rel (0) target = $region17
    $region16: #{tpu_custom_call.1} parent=1 // pred_region
      _
    $region17: #{tpu_custom_call.1} parent=1 // pred_fallthru
      _
    // Predicated region
    $region18: #{tpu_custom_call.1} parent=1 // pred_check
      _
    $region19: #{tpu_custom_call.1} parent=1 // pred_check_branch
      %47 = sbr.rel (0) target = $region21
    $region20: #{tpu_custom_call.1} parent=1 // pred_region
      %s49 = ssub.s32 1024, 1024
      %50 = vsyncadd [#allocation6], %s49
      %s51 = sshll.u32 [#allocation7], 4
      %s52 = int_to_ptr.vmem [resolvable:$true] %s51
      %57 = dma.hbm_to_vmem [thread:$0]  %s4, 1024, %s52, [#allocation6], 64, 64, 4
    $region21: #{tpu_custom_call.1} parent=1 // pred_fallthru
      _
    // Predicated region
    $region22: #{tpu_custom_call.1} parent=1 // pred_check
      _
    $region23: #{tpu_custom_call.1} parent=1 // pred_check_branch
      %59 = sbr.rel (0) target = $region25
    $region24: #{tpu_custom_call.1} parent=1 // pred_region
      _
    $region25: #{tpu_custom_call.1} parent=1 // pred_fallthru
      _
    // Predicated region
    $region26: #{tpu_custom_call.1} parent=1 // pred_check
      _
    $region27: #{tpu_custom_call.1} parent=1 // pred_check_branch
      %61 = sbr.rel (0) target = $region29
    $region28: #{tpu_custom_call.1} parent=1 // pred_region
      _
    $region29: #{tpu_custom_call.1} parent=1 // pred_fallthru
      _
    // Predicated region
    $region30: #{tpu_custom_call.1} parent=1 // pred_check
      _
    $region31: #{tpu_custom_call.1} parent=1 // pred_check_branch
      %63 = sbr.rel (0) target = $region33
    $region32: #{tpu_custom_call.1} parent=1 // pred_region
      %s65 = ssub.s32 1024, 1024
      %66 = vsyncadd [#allocation9], %s65
      %s67 = sshll.u32 [#allocation8], 4
      %s68 = int_to_ptr.vmem [resolvable:$true] %s67
      %73 = dma.hbm_to_vmem [thread:$0]  %s7, 1024, %s68, [#allocation9], 64, 64, 4
    $region33: #{tpu_custom_call.1} parent=1 // pred_fallthru
      _
    // Predicated region
    $region34: #{tpu_custom_call.1} parent=1 // pred_check
      _
    $region35: #{tpu_custom_call.1} parent=1 // pred_check_branch
      %75 = sbr.rel (0) target = $region37
    $region36: #{tpu_custom_call.1} parent=1 // pred_region
      _
    $region37: #{tpu_custom_call.1} parent=1 // pred_fallthru
      _
    // Predicated region
    $region38: #{tpu_custom_call.1} parent=1 // pred_check
      _
    $region39: #{tpu_custom_call.1} parent=1 // pred_check_branch
      %77 = sbr.rel (0) target = $region41
    $region40: #{tpu_custom_call.1} parent=1 // pred_region
      %78 = dma.done [#allocation3], 128
    $region41: #{tpu_custom_call.1} parent=1 // pred_fallthru
      _
    // Predicated region
    $region42: #{tpu_custom_call.1} parent=1 // pred_check
      _
    $region43: #{tpu_custom_call.1} parent=1 // pred_check_branch
      %80 = sbr.rel (0) target = $region45
    $region44: #{tpu_custom_call.1} parent=1 // pred_region
      %81 = dma.done [#allocation6], 1024
    $region45: #{tpu_custom_call.1} parent=1 // pred_fallthru
      _
    // Predicated region
    $region46: #{tpu_custom_call.1} parent=1 // pred_check
      _
    $region47: #{tpu_custom_call.1} parent=1 // pred_check_branch
      %83 = sbr.rel (0) target = $region49
    $region48: #{tpu_custom_call.1} parent=1 // pred_region
      %84 = dma.done [#allocation6], 1024
    $region49: #{tpu_custom_call.1} parent=1 // pred_fallthru
      _
    // Predicated region
    $region50: #{tpu_custom_call.1} parent=1 // pred_check
      _
    $region51: #{tpu_custom_call.1} parent=1 // pred_check_branch
      %86 = sbr.rel (0) target = $region53
    $region52: #{tpu_custom_call.1} parent=1 // pred_region
      %87 = dma.done [#allocation9], 1024
    $region53: #{tpu_custom_call.1} parent=1 // pred_fallthru
      _
    %v89 = vld [vmem:[#allocation2] sm:$0xf]
    %v90 = vld [vmem:[#allocation2 + $0x4] sm:$0xf]
    %v91 = vlaneseq
    %v92 = vshrl.u32 %v91, 7
    %v93 = vadd.s32 %v92, 8
    %vm94 = vcmp.lt.s32.totalorder %v92, 8
    %vm95 = vcmp.lt.s32.totalorder %v93, 8
    %v96 = vsel %vm94, 1, 0
    %v97 = vsel %vm95, 1, 0
    %v98 = vcvt.s32.f32 %v96
    %v99 = vcvt.s32.f32 %v97
    %v100 = vpack.c.bf16 %v99, %v98
    %v101 = vld [vmem:[#allocation5] sm:$0xf]
    %v102 = vld [vmem:[#allocation5 + $0x4] sm:$0xf]
    %v103 = vld [vmem:[#allocation5 + $0x8] sm:$0xf]
    %v104 = vld [vmem:[#allocation5 + $0xc] sm:$0xf]
    %v105 = vld [vmem:[#allocation5 + $0x10] sm:$0xf]
    %v106 = vld [vmem:[#allocation5 + $0x14] sm:$0xf]
    %v107 = vld [vmem:[#allocation5 + $0x18] sm:$0xf]
    %v108 = vld [vmem:[#allocation5 + $0x1c] sm:$0xf]
    %v109 = vld [vmem:[#allocation5 + $0x20] sm:$0xf]
    %v110 = vld [vmem:[#allocation5 + $0x24] sm:$0xf]
    %v111 = vld [vmem:[#allocation5 + $0x28] sm:$0xf]
    %v112 = vld [vmem:[#allocation5 + $0x2c] sm:$0xf]
    %v113 = vld [vmem:[#allocation5 + $0x30] sm:$0xf]
    %v114 = vld [vmem:[#allocation5 + $0x34] sm:$0xf]
    %v115 = vld [vmem:[#allocation5 + $0x38] sm:$0xf]
    %v116 = vld [vmem:[#allocation5 + $0x3c] sm:$0xf]
    %v119 = vunpack.c.l.b16 %v89
    %v120 = vunpack.c.l.b16 %v90
    %v121 = vpack.c.b16 %v120, %v119
    %v139 = vunpack.c.l.b16 %v101
    %v140 = vunpack.c.l.b16 %v102
    %v141 = vunpack.c.l.b16 %v103
    %v142 = vunpack.c.l.b16 %v104
    %v143 = vunpack.c.l.b16 %v105
    %v144 = vunpack.c.l.b16 %v106
    %v145 = vunpack.c.l.b16 %v107
    %v146 = vunpack.c.l.b16 %v108
    %v147 = vunpack.c.l.b16 %v109
    %v148 = vunpack.c.l.b16 %v110
    %v149 = vunpack.c.l.b16 %v111
    %v150 = vunpack.c.l.b16 %v112
    %v151 = vunpack.c.l.b16 %v113
    %v152 = vunpack.c.l.b16 %v114
    %v153 = vunpack.c.l.b16 %v115
    %v154 = vunpack.c.l.b16 %v116
    %v155 = vpack.c.b16 %v140, %v139
    %v156 = vpack.c.b16 %v142, %v141
    %v157 = vpack.c.b16 %v144, %v143
    %v158 = vpack.c.b16 %v146, %v145
    %v159 = vpack.c.b16 %v148, %v147
    %v160 = vpack.c.b16 %v150, %v149
    %v161 = vpack.c.b16 %v152, %v151
    %v162 = vpack.c.b16 %v154, %v153
    %171 = vmatprep.subr.bf16.mxu0 0
    %172 = vmatpush1.bf16.msra.mxu0 %v155
    %173 = vmatprep.subr.bf16.mxu0 0
    %174 = vmatpush1.bf16.msra.mxu0 %v156
    %175 = vmatprep.subr.bf16.mxu0 0
    %176 = vmatpush1.bf16.msra.mxu0 %v157
    %177 = vmatprep.subr.bf16.mxu0 0
    %178 = vmatpush1.bf16.msra.mxu0 %v158
    %179 = vmatprep.subr.bf16.mxu0 0
    %180 = vmatpush1.bf16.msra.mxu0 %v159
    %181 = vmatprep.subr.bf16.mxu0 0
    %182 = vmatpush1.bf16.msra.mxu0 %v160
    %183 = vmatprep.subr.bf16.mxu0 0
    %184 = vmatpush1.bf16.msra.mxu0 %v161
    %185 = vmatprep.subr.bf16.mxu0 0
    %186 = vmatpush1.bf16.msra.mxu0 %v162
    %187 = vmatprep.subr.bf16.mxu0 0
    %188 = vmatpush1.bf16.msra.mxu0 0
    %189 = vmatprep.subr.bf16.mxu0 0
    %190 = vmatpush1.bf16.msra.mxu0 0
    %191 = vmatprep.subr.bf16.mxu0 0
    %192 = vmatpush1.bf16.msra.mxu0 0
    %193 = vmatprep.subr.bf16.mxu0 0
    %194 = vmatpush1.bf16.msra.mxu0 0
    %195 = vmatprep.subr.bf16.mxu0 0
    %196 = vmatpush1.bf16.msra.mxu0 0
    %197 = vmatprep.subr.bf16.mxu0 0
    %198 = vmatpush1.bf16.msra.mxu0 0
    %199 = vmatprep.subr.bf16.mxu0 0
    %200 = vmatpush1.bf16.msra.mxu0 0
    %201 = vmatprep.subr.bf16.mxu0 0
    %202 = vmatpush1.bf16.msra.mxu0 0
    %203 = vmatprep.mubr.bf16.mxu0 0
    %204 = vmatmul.mubr.bf16.gmra.mrb[0].mxu0 %v121
    %v205 = vpop.f32.mrb[0].mxu0
    %v206 = vadd.f32 0.0, %v205
    %v207 = vpop.f32.mrb[0].mxu0
    %v208 = vpop.f32.mrb[0].mxu0
    %v209 = vadd.f32 0.0, %v208
    %v210 = vpop.f32.mrb[0].mxu0
    %211 = vdwg.mxu0
    %v212 = vadd.f32 %v206, %v209
    %v213 = vrot.slane %v212, 4
    %v214 = vadd.f32 %v212, %v213
    %v215 = vrot.slane %v214, 2
    %v216 = vadd.f32 %v214, %v215
    %v217 = vrot.slane %v216, 1
    %v218 = vadd.f32 %v216, %v217
    %v219 = vmul.f32 %v206, %v206
    %v220 = vmul.f32 %v209, %v209
    %v221 = vadd.f32 %v219, %v220
    %v222 = vrot.slane %v221, 4
    %v223 = vadd.f32 %v221, %v222
    %v224 = vrot.slane %v223, 2
    %v225 = vadd.f32 %v223, %v224
    %v226 = vrot.slane %v225, 1
    %v227 = vadd.f32 %v225, %v226
    %v228 = vmul.f32 %v218, 0.125
    %v229 = vmul.f32 %v227, 0.125
    %v230 = vmul.f32 %v228, %v228
    %v231 = vsub.f32 %v229, %v230
    %v232 = vsub.f32 %v206, %v228
    %v233 = vsub.f32 %v209, %v228
    %v234 = vadd.f32 %v231, 1e-05
    %v235 = vrsqrt.pop %v234
    %v236 = vmul.f32 %v232, %v235
    %v237 = vmul.f32 %v233, %v235
    %v238 = vld [vmem:[%s2] sm:$0x1]
    %v240 = vlaneseq
    %v241 = vshrl.u32 %v240, 7
    %v242 = vsub.s32 0, %v241
    %v243 = vrot.slane %v238, %v242
    %v245 = vmul.f32 %v243, %v236
    %v246 = vmul.f32 %v243, %v237
    %v247 = vld [vmem:[%s3] sm:$0x1]
    %v249 = vlaneseq
    %v250 = vshrl.u32 %v249, 7
    %v251 = vsub.s32 0, %v250
    %v252 = vrot.slane %v247, %v251
    %v254 = vadd.f32 %v245, %v252
    %v255 = vadd.f32 %v246, %v252
    %v256 = vmax.f32 %v254, 0.0
    %v257 = vmax.f32 %v255, 0.0
    %v258 = vpack.c.bf16 %v257, %v256
    %v259 = vmul.bf16 %v258, %v100
    %v260 = vld [vmem:[#allocation7] sm:$0xf]
    %v261 = vld [vmem:[#allocation7 + $0x4] sm:$0xf]
    %v262 = vld [vmem:[#allocation7 + $0x8] sm:$0xf]
    %v263 = vld [vmem:[#allocation7 + $0xc] sm:$0xf]
    %v264 = vld [vmem:[#allocation7 + $0x10] sm:$0xf]
    %v265 = vld [vmem:[#allocation7 + $0x14] sm:$0xf]
    %v266 = vld [vmem:[#allocation7 + $0x18] sm:$0xf]
    %v267 = vld [vmem:[#allocation7 + $0x1c] sm:$0xf]
    %v268 = vld [vmem:[#allocation7 + $0x20] sm:$0xf]
    %v269 = vld [vmem:[#allocation7 + $0x24] sm:$0xf]
    %v270 = vld [vmem:[#allocation7 + $0x28] sm:$0xf]
    %v271 = vld [vmem:[#allocation7 + $0x2c] sm:$0xf]
    %v272 = vld [vmem:[#allocation7 + $0x30] sm:$0xf]
    %v273 = vld [vmem:[#allocation7 + $0x34] sm:$0xf]
    %v274 = vld [vmem:[#allocation7 + $0x38] sm:$0xf]
    %v275 = vld [vmem:[#allocation7 + $0x3c] sm:$0xf]
    %v292 = vunpack.c.l.b16 %v260
    %v293 = vunpack.c.l.b16 %v261
    %v294 = vunpack.c.l.b16 %v262
    %v295 = vunpack.c.l.b16 %v263
    %v296 = vunpack.c.l.b16 %v264
    %v297 = vunpack.c.l.b16 %v265
    %v298 = vunpack.c.l.b16 %v266
    %v299 = vunpack.c.l.b16 %v267
    %v300 = vunpack.c.l.b16 %v268
    %v301 = vunpack.c.l.b16 %v269
    %v302 = vunpack.c.l.b16 %v270
    %v303 = vunpack.c.l.b16 %v271
    %v304 = vunpack.c.l.b16 %v272
    %v305 = vunpack.c.l.b16 %v273
    %v306 = vunpack.c.l.b16 %v274
    %v307 = vunpack.c.l.b16 %v275
    %v308 = vpack.c.b16 %v293, %v292
    %v309 = vpack.c.b16 %v295, %v294
    %v310 = vpack.c.b16 %v297, %v296
    %v311 = vpack.c.b16 %v299, %v298
    %v312 = vpack.c.b16 %v301, %v300
    %v313 = vpack.c.b16 %v303, %v302
    %v314 = vpack.c.b16 %v305, %v304
    %v315 = vpack.c.b16 %v307, %v306
    %324 = vmatprep.subr.bf16.mxu0 0
    %325 = vmatpush1.bf16.msra.mxu0 %v308
    %326 = vmatprep.subr.bf16.mxu0 0
    %327 = vmatpush1.bf16.msra.mxu0 %v309
    %328 = vmatprep.subr.bf16.mxu0 0
    %329 = vmatpush1.bf16.msra.mxu0 %v310
    %330 = vmatprep.subr.bf16.mxu0 0
    %331 = vmatpush1.bf16.msra.mxu0 %v311
    %332 = vmatprep.subr.bf16.mxu0 0
    %333 = vmatpush1.bf16.msra.mxu0 %v312
    %334 = vmatprep.subr.bf16.mxu0 0
    %335 = vmatpush1.bf16.msra.mxu0 %v313
    %336 = vmatprep.subr.bf16.mxu0 0
    %337 = vmatpush1.bf16.msra.mxu0 %v314
    %338 = vmatprep.subr.bf16.mxu0 0
    %339 = vmatpush1.bf16.msra.mxu0 %v315
    %340 = vmatprep.subr.bf16.mxu0 0
    %341 = vmatpush1.bf16.msra.mxu0 0
    %342 = vmatprep.subr.bf16.mxu0 0
    %343 = vmatpush1.bf16.msra.mxu0 0
    %344 = vmatprep.subr.bf16.mxu0 0
    %345 = vmatpush1.bf16.msra.mxu0 0
    %346 = vmatprep.subr.bf16.mxu0 0
    %347 = vmatpush1.bf16.msra.mxu0 0
    %348 = vmatprep.subr.bf16.mxu0 0
    %349 = vmatpush1.bf16.msra.mxu0 0
    %350 = vmatprep.subr.bf16.mxu0 0
    %351 = vmatpush1.bf16.msra.mxu0 0
    %352 = vmatprep.subr.bf16.mxu0 0
    %353 = vmatpush1.bf16.msra.mxu0 0
    %354 = vmatprep.subr.bf16.mxu0 0
    %355 = vmatpush1.bf16.msra.mxu0 0
    %356 = vmatprep.mubr.bf16.mxu0 0
    %357 = vmatmul.mubr.bf16.gmra.mrb[0].mxu0 %v259
    %v358 = vpop.f32.mrb[0].mxu0
    %v359 = vadd.f32 0.0, %v358
    %v360 = vpop.f32.mrb[0].mxu0
    %v361 = vpop.f32.mrb[0].mxu0
    %v362 = vadd.f32 0.0, %v361
    %v363 = vpop.f32.mrb[0].mxu0
    %364 = vdwg.mxu0
    %v365 = vadd.f32 %v359, %v362
    %v366 = vrot.slane %v365, 4
    %v367 = vadd.f32 %v365, %v366
    %v368 = vrot.slane %v367, 2
    %v369 = vadd.f32 %v367, %v368
    %v370 = vrot.slane %v369, 1
    %v371 = vadd.f32 %v369, %v370
    %v372 = vmul.f32 %v359, %v359
    %v373 = vmul.f32 %v362, %v362
    %v374 = vadd.f32 %v372, %v373
    %v375 = vrot.slane %v374, 4
    %v376 = vadd.f32 %v374, %v375
    %v377 = vrot.slane %v376, 2
    %v378 = vadd.f32 %v376, %v377
    %v379 = vrot.slane %v378, 1
    %v380 = vadd.f32 %v378, %v379
    %v381 = vmul.f32 %v371, 0.125
    %v382 = vmul.f32 %v380, 0.125
    %v383 = vmul.f32 %v381, %v381
    %v384 = vsub.f32 %v382, %v383
    %v385 = vsub.f32 %v359, %v381
    %v386 = vsub.f32 %v362, %v381
    %v387 = vadd.f32 %v384, 1e-05
    %v388 = vrsqrt.pop %v387
    %v389 = vmul.f32 %v385, %v388
    %v390 = vmul.f32 %v386, %v388
    %v391 = vld [vmem:[%s5] sm:$0x1]
    %v393 = vlaneseq
    %v394 = vshrl.u32 %v393, 7
    %v395 = vsub.s32 0, %v394
    %v396 = vrot.slane %v391, %v395
    %v398 = vmul.f32 %v396, %v389
    %v399 = vmul.f32 %v396, %v390
    %v400 = vld [vmem:[%s6] sm:$0x1]
    %v402 = vlaneseq
    %v403 = vshrl.u32 %v402, 7
    %v404 = vsub.s32 0, %v403
    %v405 = vrot.slane %v400, %v404
    %v407 = vadd.f32 %v398, %v405
    %v408 = vadd.f32 %v399, %v405
    %v409 = vmax.f32 %v407, 0.0
    %v410 = vmax.f32 %v408, 0.0
    %v411 = vpack.c.bf16 %v410, %v409
    %v412 = vmul.bf16 %v411, %v100
    %v413 = vld [vmem:[#allocation8] sm:$0xf]
    %v414 = vld [vmem:[#allocation8 + $0x4] sm:$0xf]
    %v415 = vld [vmem:[#allocation8 + $0x8] sm:$0xf]
    %v416 = vld [vmem:[#allocation8 + $0xc] sm:$0xf]
    %v417 = vld [vmem:[#allocation8 + $0x10] sm:$0xf]
    %v418 = vld [vmem:[#allocation8 + $0x14] sm:$0xf]
    %v419 = vld [vmem:[#allocation8 + $0x18] sm:$0xf]
    %v420 = vld [vmem:[#allocation8 + $0x1c] sm:$0xf]
    %v421 = vld [vmem:[#allocation8 + $0x20] sm:$0xf]
    %v422 = vld [vmem:[#allocation8 + $0x24] sm:$0xf]
    %v423 = vld [vmem:[#allocation8 + $0x28] sm:$0xf]
    %v424 = vld [vmem:[#allocation8 + $0x2c] sm:$0xf]
    %v425 = vld [vmem:[#allocation8 + $0x30] sm:$0xf]
    %v426 = vld [vmem:[#allocation8 + $0x34] sm:$0xf]
    %v427 = vld [vmem:[#allocation8 + $0x38] sm:$0xf]
    %v428 = vld [vmem:[#allocation8 + $0x3c] sm:$0xf]
    %v429 = vld [vmem:[%s8] sm:$0x1]
    %v431 = vlaneseq
    %v432 = vshrl.u32 %v431, 7
    %v433 = vsub.s32 0, %v432
    %v434 = vrot.slane %v429, %v433
    %v452 = vunpack.c.l.b16 %v413
    %v453 = vunpack.c.l.b16 %v414
    %v454 = vunpack.c.l.b16 %v415
    %v455 = vunpack.c.l.b16 %v416
    %v456 = vunpack.c.l.b16 %v417
    %v457 = vunpack.c.l.b16 %v418
    %v458 = vunpack.c.l.b16 %v419
    %v459 = vunpack.c.l.b16 %v420
    %v460 = vunpack.c.l.b16 %v421
    %v461 = vunpack.c.l.b16 %v422
    %v462 = vunpack.c.l.b16 %v423
    %v463 = vunpack.c.l.b16 %v424
    %v464 = vunpack.c.l.b16 %v425
    %v465 = vunpack.c.l.b16 %v426
    %v466 = vunpack.c.l.b16 %v427
    %v467 = vunpack.c.l.b16 %v428
    %v468 = vpack.c.b16 %v453, %v452
    %v469 = vpack.c.b16 %v455, %v454
    %v470 = vpack.c.b16 %v457, %v456
    %v471 = vpack.c.b16 %v459, %v458
    %v472 = vpack.c.b16 %v461, %v460
    %v473 = vpack.c.b16 %v463, %v462
    %v474 = vpack.c.b16 %v465, %v464
    %v475 = vpack.c.b16 %v467, %v466
    %484 = vmatprep.subr.bf16.mxu0 0
    %485 = vmatpush1.bf16.msra.mxu0 %v468
    %486 = vmatprep.subr.bf16.mxu0 0
    %487 = vmatpush1.bf16.msra.mxu0 %v469
    %488 = vmatprep.subr.bf16.mxu0 0
    %489 = vmatpush1.bf16.msra.mxu0 %v470
    %490 = vmatprep.subr.bf16.mxu0 0
    %491 = vmatpush1.bf16.msra.mxu0 %v471
    %492 = vmatprep.subr.bf16.mxu0 0
    %493 = vmatpush1.bf16.msra.mxu0 %v472
    %494 = vmatprep.subr.bf16.mxu0 0
    %495 = vmatpush1.bf16.msra.mxu0 %v473
    %496 = vmatprep.subr.bf16.mxu0 0
    %497 = vmatpush1.bf16.msra.mxu0 %v474
    %498 = vmatprep.subr.bf16.mxu0 0
    %499 = vmatpush1.bf16.msra.mxu0 %v475
    %500 = vmatprep.subr.bf16.mxu0 0
    %501 = vmatpush1.bf16.msra.mxu0 0
    %502 = vmatprep.subr.bf16.mxu0 0
    %503 = vmatpush1.bf16.msra.mxu0 0
    %504 = vmatprep.subr.bf16.mxu0 0
    %505 = vmatpush1.bf16.msra.mxu0 0
    %506 = vmatprep.subr.bf16.mxu0 0
    %507 = vmatpush1.bf16.msra.mxu0 0
    %508 = vmatprep.subr.bf16.mxu0 0
    %509 = vmatpush1.bf16.msra.mxu0 0
    %510 = vmatprep.subr.bf16.mxu0 0
    %511 = vmatpush1.bf16.msra.mxu0 0
    %512 = vmatprep.subr.bf16.mxu0 0
    %513 = vmatpush1.bf16.msra.mxu0 0
    %514 = vmatprep.subr.bf16.mxu0 0
    %515 = vmatpush1.bf16.msra.mxu0 0
    %516 = vmatprep.mubr.bf16.mxu0 0
    %517 = vmatmul.mubr.bf16.gmra.mrb[0].mxu0 %v412
    %v518 = vpop.f32.mrb[0].mxu0
    %v519 = vadd.f32 %v434, %v518
    %v520 = vpop.f32.mrb[0].mxu0
    %v521 = vpop.f32.mrb[0].mxu0
    %v522 = vadd.f32 %v434, %v521
    %v523 = vpop.f32.mrb[0].mxu0
    %524 = vdwg.mxu0
    %525 = vst [vmem:[#allocation10] sm:$0xff] %v519
    %526 = vst [vmem:[#allocation10 + $0x8] sm:$0xff] %v522
    // Predicated region
    $region54: #{tpu_custom_call.1} parent=1 // pred_check
      _
    $region55: #{tpu_custom_call.1} parent=1 // pred_check_branch
      %528 = sbr.rel (0) target = $region57
    $region56: #{tpu_custom_call.1} parent=1 // pred_region
      %s530 = ssub.s32 256, 256
      %531 = vsyncadd [#allocation4], %s530
      %s532 = sshll.u32 [#allocation10], 4
      %s533 = int_to_ptr.vmem [resolvable:$true] %s532
      %538 = dma.vmem_to_hbm [thread:$0]  %s533, 256, %s9, [#allocation4], 128, 128, 8
    $region57: #{tpu_custom_call.1} parent=1 // pred_fallthru
      _
    // Predicated region
    $region58: #{tpu_custom_call.1} parent=1 // pred_check
      _
    $region59: #{tpu_custom_call.1} parent=1 // pred_check_branch
      %540 = sbr.rel (0) target = $region61
    $region60: #{tpu_custom_call.1} parent=1 // pred_region
      %541 = dma.done [#allocation4], 256
    $region61: #{tpu_custom_call.1} parent=1 // pred_fallthru
      _
    %542 = vsyncpa [#allocation3], 1
    %543 = vsyncpa [#allocation6], 1
    %544 = vsyncpa [#allocation9], 1
    %545 = vsyncpa [#allocation4], 1

</llo_original>
